<compile_context>
chip_gen: v5e
topology: v5e:2x2
jax: 0.10.0
libtpu: 0.0.40
codegen_flags: <defaults>
</compile_context>

<pallas_src>
import jax
import jax.numpy as jnp
from jax.experimental import pallas as pl
from jax.experimental.pallas import tpu as pltpu

KSIZE = 5                 # Conv1d(1, 1, kernel_size=5, padding=2, bias=False)
PAD = (KSIZE - 1) // 2
N_INFLIGHT = 16           # outstanding gather DMAs per grid step (HBM path)


# ---------------------------------------------------------------------------
# generation-aware VMEM budgets
# ---------------------------------------------------------------------------
def _tpu_vmem_capacity_bytes():
    try:
        return int(pltpu.get_tpu_info().vmem_capacity_bytes)
    except Exception:  # pragma: no cover - conservative fallback
        return 64 << 20            # assume the smallest (v7x-sized) VMEM


def _block_budget_bytes():
    """Target size for a single pipelined block (Pallas double-buffers it)."""
    cap = _tpu_vmem_capacity_bytes()
    # ~8 MiB blocks on v5e/v6e (128 MiB VMEM), ~4 MiB on v7x (64 MiB VMEM).
    return max(1 << 20, min(8 << 20, cap // 16))


def _vmem_limit_bytes():
    cap = _tpu_vmem_capacity_bytes()
    return int(min(64 << 20, cap // 2))


# ---------------------------------------------------------------------------
# static tile-size helpers
# ---------------------------------------------------------------------------
def _pick_pool_tiles(b, c, hw, itemsize, budget_bytes):
    # Spatial chunk: contiguous & lane-dense. Prefer the biggest 128-multiple
    # divisor of HW that fits the budget (whole row when possible); if HW has
    # no 128-divisor the only legal block is the full row.
    if hw % 128 == 0:
        chunk_cands = [d for d in range(128, hw + 1, 128) if hw % d == 0]
    else:
        chunk_cands = [hw]
    # Channel tile: keep the (b, ct) OUTPUT block legal too (last dim must be
    # a multiple of 128 or the full C), so candidates are 128-multiples or C.
    if c % 128 == 0:
        ct_cands = [d for d in range(128, c + 1, 128) if c % d == 0]
    else:
        ct_cands = [c]
    ct_min = min(ct_cands)

    chunk = chunk_cands[0]
    for cand in chunk_cands:
        if b * ct_min * cand * itemsize <= budget_bytes:
            chunk = cand

    fits = [t for t in ct_cands if b * t * chunk * itemsize <= budget_bytes]
    if not fits:
        ct = ct_min
    else:
        # Prefer >=2 channel blocks so the "parallel" axis feeds v7x's 2 TCs.
        multi = [t for t in fits if c // t >= 2]
        ct = max(multi) if multi else max(fits)
    return ct, chunk


# ---------------------------------------------------------------------------
# Kernel A: tiled global average pool  (B, C, HW) -> (B, C) f32
# ---------------------------------------------------------------------------
def global_avg_pool(x3, *, budget_bytes, vmem_limit):
    b, c, hw = x3.shape
    ct, chunk = _pick_pool_tiles(b, c, hw, x3.dtype.itemsize, budget_bytes)
    inv_hw = 1.0 / float(hw)
    lane_acc = (chunk % 128 == 0)
    n_lane = chunk // 128 if lane_acc else 0

    def kernel(x_ref, o_ref, acc_ref):
        x = x_ref[...].astype(jnp.float32)            # (b, ct, chunk)

        if not lane_acc:
            # HW has no 128-divisor => single reduction step; reduce directly.
            o_ref[...] = jnp.sum(x, axis=-1) * inv_hw
            return

        k = pl.program_id(1)

        @pl.when(k == 0)
        def _init():
            acc_ref[...] = jnp.zeros_like(acc_ref)

        # Per-step work is pure VPU adds into the lane-wide accumulator.
        part = acc_ref[...]
        for j in range(n_lane):                       # static, tile-aligned slices
            part = part + x[:, :, j * 128:(j + 1) * 128]
        acc_ref[...] = part

        @pl.when(k == pl.num_programs(1) - 1)
        def _finalize():
            # Single cross-lane (XLU) reduce per output tile.
            o_ref[...] = jnp.sum(acc_ref[...], axis=-1) * inv_hw

    grid = (c // ct, hw // chunk)
    return pl.pallas_call(
        kernel,
        out_shape=jax.ShapeDtypeStruct((b, c), jnp.float32),
        grid_spec=pltpu.PrefetchScalarGridSpec(
            num_scalar_prefetch=0,
            grid=grid,
            in_specs=[pl.BlockSpec((b, ct, chunk), lambda i, k: (0, i, k))],
            out_specs=pl.BlockSpec((b, ct), lambda i, k: (0, i)),
            scratch_shapes=[pltpu.VMEM((b, ct, 128), jnp.float32)],
        ),
        compiler_params=pltpu.CompilerParams(
            dimension_semantics=("parallel", "arbitrary"),
            vmem_limit_bytes=vmem_limit),
        cost_estimate=pl.CostEstimate(
            flops=b * c * hw,
            transcendentals=0,
            bytes_accessed=x3.size * x3.dtype.itemsize + b * c * 4),
    )(x3)


# ---------------------------------------------------------------------------
# Conv1d(k=5, pad=2, no bias) + sigmoid on the tiny pooled vector: plain jnp.
# A dedicated pallas_call here is pure launch overhead (per perf review).
# ---------------------------------------------------------------------------
def conv5_sigmoid(pooled, weight_flat):
    b, c = pooled.shape
    w = weight_flat.astype(jnp.float32)
    p = jnp.pad(pooled.astype(jnp.float32), ((0, 0), (PAD, PAD)))   # (B, C+4)
    acc = sum(w[k] * p[:, k:k + c] for k in range(KSIZE))
    return jax.nn.sigmoid(acc)


# ---------------------------------------------------------------------------
# Kernel C1: small-slab gather — whole (C, HW) slab per batch in VMEM,
# on-chip row permute, one contiguous block write back.
# ---------------------------------------------------------------------------
def _gather_slab(x3, indices, *, vmem_limit):
    b, c, hw = x3.shape
    idx_flat = indices.astype(jnp.int32).reshape(-1)        # (B*C,) SMEM prefetch
    unroll = c <= 32

    def kernel(idx_ref, x_ref, o_ref):
        bi = pl.program_id(0)

        def copy_row(ci):
            ch = idx_ref[bi * c + ci]
            o_ref[pl.ds(ci, 1), :] = x_ref[pl.ds(ch, 1), :]

        if unroll:
            for ci in range(c):                  # static destination rows
                copy_row(ci)
        else:
            @pl.loop(0, c)
            def _rows(ci):
                copy_row(ci)

    return pl.pallas_call(
        kernel,
        out_shape=jax.ShapeDtypeStruct((b, c, hw), x3.dtype),
        grid_spec=pltpu.PrefetchScalarGridSpec(
            num_scalar_prefetch=1,
            grid=(b,),
            in_specs=[pl.BlockSpec((None, c, hw), lambda bi, idx: (bi, 0, 0))],
            out_specs=pl.BlockSpec((None, c, hw), lambda bi, idx: (bi, 0, 0)),
        ),
        compiler_params=pltpu.CompilerParams(
            dimension_semantics=("parallel",),
            vmem_limit_bytes=vmem_limit),
        cost_estimate=pl.CostEstimate(
            flops=0, transcendentals=0,
            bytes_accessed=2 * x3.size * x3.dtype.itemsize + idx_flat.size * 4),
    )(idx_flat, x3)


# ---------------------------------------------------------------------------
# Kernel C2: large-slab gather — HBM -> HBM row DMAs, no VMEM staging,
# one grid step per whole batch row, 16 in-flight descriptors.
# ---------------------------------------------------------------------------
def _gather_hbm(x3, indices):
    b, c, hw = x3.shape
    idx_flat = indices.astype(jnp.int32).reshape(-1)

    def kernel(idx_ref, x_hbm, o_hbm, sems):
        bi = pl.program_id(0)

        def start(src_ch, dst_ci, slot):
            pltpu.make_async_copy(
                x_hbm.at[bi, src_ch], o_hbm.at[bi, dst_ci], sems.at[slot]).start()

        def wait(slot):
            # Same-sized descriptor; only the semaphore / byte count matter
            # (every row is exactly HW * itemsize bytes).
            pltpu.make_async_copy(
                x_hbm.at[bi, 0], o_hbm.at[bi, 0], sems.at[slot]).wait()

        n_prime = min(N_INFLIGHT, c)
        for ci in range(n_prime):                # prime the in-flight window
            start(idx_ref[bi * c + ci], ci, ci % N_INFLIGHT)
        if c > N_INFLIGHT:
            @pl.loop(N_INFLIGHT, c)
            def _steady(ci):
                ch = idx_ref[bi * c + ci]        # read index BEFORE the wait
                slot = ci % N_INFLIGHT
                wait(slot)                       # retire the oldest copy here
                start(ch, ci, slot)
        for slot in range(n_prime):              # drain remaining copies
            wait(slot)

    return pl.pallas_call(
        kernel,
        out_shape=jax.ShapeDtypeStruct((b, c, hw), x3.dtype),
        grid_spec=pltpu.PrefetchScalarGridSpec(
            num_scalar_prefetch=1,
            grid=(b,),
            in_specs=[pl.BlockSpec(memory_space=pl.ANY)],     # x stays in HBM
            out_specs=pl.BlockSpec(memory_space=pl.ANY),      # written via DMA
            scratch_shapes=[pltpu.SemaphoreType.DMA((N_INFLIGHT,))],
        ),
        compiler_params=pltpu.CompilerParams(
            dimension_semantics=("arbitrary",),
            has_side_effects=True),
        cost_estimate=pl.CostEstimate(
            flops=0, transcendentals=0,
            bytes_accessed=2 * x3.size * x3.dtype.itemsize + idx_flat.size * 4),
    )(idx_flat, x3)


def channel_gather(x3, indices, *, budget_bytes, vmem_limit):
    """out[b, c] = x3[b, indices[b, c]] for x3 of shape (B, C, HW)."""
    b, c, hw = x3.shape
    slab_bytes = c * hw * x3.dtype.itemsize
    if slab_bytes <= budget_bytes:
        return _gather_slab(x3, indices, vmem_limit=vmem_limit)
    return _gather_hbm(x3, indices)


# ---------------------------------------------------------------------------
# Full ECA layer forward
# ---------------------------------------------------------------------------
def eca_layer(x, conv_weight):
    b, c, h, w = x.shape
    x3 = x.reshape(b, c, h * w)                    # lane-dense spatial view
    budget = _block_budget_bytes()
    vmem_limit = _vmem_limit_bytes()

    pooled = global_avg_pool(x3, budget_bytes=budget, vmem_limit=vmem_limit)
    # PyTorch Conv1d weight is (1, 1, 5); accept any shape and flatten.
    scores = conv5_sigmoid(pooled, conv_weight.reshape(-1))        # (B, C)
    # torch.topk(..., largest=True, sorted=True) over channels == descending
    # argsort of the scores (tiny (B, C) XLA glue).
    # TODO(synk): torch.topk tie-break order is unspecified; exactly tied
    # scores may permute differently than PyTorch (still a valid ordering).
    indices = jnp.argsort(-scores, axis=1).astype(jnp.int32)
    out3 = channel_gather(x3, indices, budget_bytes=budget, vmem_limit=vmem_limit)
    return out3.reshape(b, c, h, w)


if __name__ == "__main__":
    key = jax.random.PRNGKey(0)
    kx, kw = jax.random.split(key)

    B, C, H, W = 2, 4, 16, 16
    x = jax.random.normal(kx, (B, C, H, W), dtype=jnp.float32)
    # Synthetic Conv1d(1, 1, 5, bias=False) weight in PyTorch layout (1, 1, 5).
    conv_weight = jax.random.normal(kw, (1, 1, KSIZE), dtype=jnp.float32) * 0.4

    out = jax.block_until_ready(jax.jit(eca_layer)(x, conv_weight))

    # Pure-JAX reference for a sanity check.
    wflat = conv_weight.reshape(-1)
    pooled_ref = x.mean(axis=(2, 3))                                   # (B, C)
    pad_ref = jnp.pad(pooled_ref, ((0, 0), (PAD, PAD)))
    conv_ref = sum(wflat[k] * pad_ref[:, k:k + C] for k in range(KSIZE))
    y_ref = jax.nn.sigmoid(conv_ref)
    idx_ref = jnp.argsort(-y_ref, axis=1)
    ref = jnp.take_along_axis(x, idx_ref[:, :, None, None], axis=1)

    assert out.shape == (B, C, H, W)
    assert jnp.allclose(out, ref, atol=1e-5), "mismatch vs reference"
    print("KERNEL_OK")
</pallas_src>

<mosaic_0001>
module attributes {stable_mosaic.version = 11 : i64} {
  func.func @kernel(%arg0: i32, %arg1: i32, %arg2: memref<2x4x256xf32, #tpu.memory_space<vmem>>, %arg3: memref<2x4xf32, #tpu.memory_space<vmem>>, %arg4: memref<2x4x128xf32, #tpu.memory_space<vmem>>) attributes {dimension_semantics = [#tpu.dimension_semantics<parallel>, #tpu.dimension_semantics<arbitrary>], iteration_bounds = array<i64: 1, 1>, scalar_prefetch = 0 : i64, scratch_operands = 1 : i64, tpu.core_type = #tpu.core_type<tc>, window_params = [{transform_indices = @transform_0, window_bounds = array<i64: 2, 4, 256>}, {transform_indices = @transform_1, window_bounds = array<i64: 2, 4>}]} {
    %c0 = arith.constant 0 : index
    %c0_0 = arith.constant 0 : index
    %c0_1 = arith.constant 0 : index
    %0 = vector.load %arg2[%c0, %c0_0, %c0_1] : memref<2x4x256xf32, #tpu.memory_space<vmem>>, vector<2x4x256xf32>
    %c0_i32 = arith.constant 0 : i32
    %1 = arith.cmpi eq, %arg1, %c0_i32 : i32
    %2 = arith.extui %1 : i1 to i32
    %c0_i32_2 = arith.constant 0 : i32
    %3 = arith.cmpi ne, %2, %c0_i32_2 : i32
    scf.if %3 {
      %cst = arith.constant 0.000000e+00 : f32
      %13 = vector.broadcast %cst : f32 to vector<2x4x128xf32>
      %c0_11 = arith.constant 0 : index
      %c0_12 = arith.constant 0 : index
      %c0_13 = arith.constant 0 : index
      %14 = vector.load %arg4[%c0_11, %c0_12, %c0_13] : memref<2x4x128xf32, #tpu.memory_space<vmem>>, vector<2x4x128xf32>
      tpu.vector_store %arg4[%c0_11, %c0_12, %c0_13], %13 {strides = array<i32>} : memref<2x4x128xf32, #tpu.memory_space<vmem>>, vector<2x4x128xf32>,
    } else {
    }
    %c0_3 = arith.constant 0 : index
    %c0_4 = arith.constant 0 : index
    %c0_5 = arith.constant 0 : index
    %4 = vector.load %arg4[%c0_3, %c0_4, %c0_5] : memref<2x4x128xf32, #tpu.memory_space<vmem>>, vector<2x4x128xf32>
    %5 = vector.extract_strided_slice %0 {offsets = [0, 0, 0], sizes = [2, 4, 128], strides = [1, 1, 1]} : vector<2x4x256xf32> to vector<2x4x128xf32>
    %6 = arith.addf %4, %5 : vector<2x4x128xf32>
    %7 = vector.extract_strided_slice %0 {offsets = [0, 0, 128], sizes = [2, 4, 128], strides = [1, 1, 1]} : vector<2x4x256xf32> to vector<2x4x128xf32>
    %8 = arith.addf %6, %7 : vector<2x4x128xf32>
    %c0_6 = arith.constant 0 : index
    %c0_7 = arith.constant 0 : index
    %c0_8 = arith.constant 0 : index
    %9 = vector.load %arg4[%c0_6, %c0_7, %c0_8] : memref<2x4x128xf32, #tpu.memory_space<vmem>>, vector<2x4x128xf32>
    tpu.vector_store %arg4[%c0_6, %c0_7, %c0_8], %8 {strides = array<i32>} : memref<2x4x128xf32, #tpu.memory_space<vmem>>, vector<2x4x128xf32>,
    %c0_i32_9 = arith.constant 0 : i32
    %10 = arith.cmpi eq, %arg1, %c0_i32_9 : i32
    %11 = arith.extui %10 : i1 to i32
    %c0_i32_10 = arith.constant 0 : i32
    %12 = arith.cmpi ne, %11, %c0_i32_10 : i32
    scf.if %12 {
      %c0_11 = arith.constant 0 : index
      %c0_12 = arith.constant 0 : index
      %c0_13 = arith.constant 0 : index
      %13 = vector.load %arg4[%c0_11, %c0_12, %c0_13] : memref<2x4x128xf32, #tpu.memory_space<vmem>>, vector<2x4x128xf32>
      %cst = arith.constant dense<0.000000e+00> : vector<2x4xf32>
      %14 = vector.multi_reduction <add>, %13, %cst [2] : vector<2x4x128xf32> to vector<2x4xf32>
      %cst_14 = arith.constant 3.906250e-03 : f32
      %15 = vector.broadcast %cst_14 : f32 to vector<2x4xf32>
      %16 = arith.mulf %14, %15 : vector<2x4xf32>
      %c0_15 = arith.constant 0 : index
      %c0_16 = arith.constant 0 : index
      %17 = vector.load %arg3[%c0_15, %c0_16] : memref<2x4xf32, #tpu.memory_space<vmem>>, vector<2x4xf32>
      tpu.vector_store %arg3[%c0_15, %c0_16], %16 {strides = array<i32>} : memref<2x4xf32, #tpu.memory_space<vmem>>, vector<2x4xf32>,
    } else {
    }
    return
  }
  func.func @transform_0(%arg0: i32, %arg1: i32) -> (i32, i32, i32) {
    %c0_i32 = arith.constant 0 : i32
    %c0_i32_0 = arith.constant 0 : i32
    return %c0_i32, %arg0, %arg1 : i32, i32, i32
  }
  func.func @transform_1(%arg0: i32, %arg1: i32) -> (i32, i32) {
    %c0_i32 = arith.constant 0 : i32
    %c0_i32_0 = arith.constant 0 : i32
    return %c0_i32, %arg0 : i32, i32
  }
}

module attributes {stable_mosaic.version = 11 : i64} {
  func.func @kernel(%arg0: i32, %arg1: memref<8xi32, #tpu.memory_space<smem>>, %arg2: memref<1x4x256xf32, #tpu.memory_space<vmem>>, %arg3: memref<1x4x256xf32, #tpu.memory_space<vmem>>) attributes {dimension_semantics = [#tpu.dimension_semantics<parallel>], iteration_bounds = array<i64: 2>, scalar_prefetch = 1 : i64, scratch_operands = 0 : i64, tpu.core_type = #tpu.core_type<tc>, window_params = [{transform_indices = @transform_0, window_bounds = array<i64: 1, 4, 256>}, {transform_indices = @transform_1, window_bounds = array<i64: 1, 4, 256>}]} {
    %c4_i32 = arith.constant 4 : i32
    %0 = arith.muli %arg0, %c4_i32 : i32
    %c0_i32 = arith.constant 0 : i32
    %1 = arith.addi %0, %c0_i32 : i32
    %2 = arith.index_cast %1 : i32 to index
    %3 = memref.load %arg1[%2] : memref<8xi32, #tpu.memory_space<smem>>
    %c0 = arith.constant 0 : index
    %4 = arith.index_cast %3 : i32 to index
    %c0_0 = arith.constant 0 : index
    %5 = vector.load %arg2[%c0, %4, %c0_0] : memref<1x4x256xf32, #tpu.memory_space<vmem>>, vector<1x1x256xf32>
    %6 = vector.shape_cast %5 : vector<1x1x256xf32> to vector<1x256xf32>
    %c0_1 = arith.constant 0 : index
    %c0_2 = arith.constant 0 : index
    %c0_3 = arith.constant 0 : index
    %7 = vector.load %arg3[%c0_1, %c0_2, %c0_3] : memref<1x4x256xf32, #tpu.memory_space<vmem>>, vector<1x1x256xf32>
    %8 = vector.shape_cast %7 : vector<1x1x256xf32> to vector<1x256xf32>
    %9 = vector.shape_cast %6 : vector<1x256xf32> to vector<1x1x256xf32>
    tpu.vector_store %arg3[%c0_1, %c0_2, %c0_3], %9 {strides = array<i32>} : memref<1x4x256xf32, #tpu.memory_space<vmem>>, vector<1x1x256xf32>,
    %c4_i32_4 = arith.constant 4 : i32
    %10 = arith.muli %arg0, %c4_i32_4 : i32
    %c1_i32 = arith.constant 1 : i32
    %11 = arith.addi %10, %c1_i32 : i32
    %12 = arith.index_cast %11 : i32 to index
    %13 = memref.load %arg1[%12] : memref<8xi32, #tpu.memory_space<smem>>
    %c0_5 = arith.constant 0 : index
    %14 = arith.index_cast %13 : i32 to index
    %c0_6 = arith.constant 0 : index
    %15 = vector.load %arg2[%c0_5, %14, %c0_6] : memref<1x4x256xf32, #tpu.memory_space<vmem>>, vector<1x1x256xf32>
    %16 = vector.shape_cast %15 : vector<1x1x256xf32> to vector<1x256xf32>
    %c0_7 = arith.constant 0 : index
    %c1 = arith.constant 1 : index
    %c0_8 = arith.constant 0 : index
    %17 = vector.load %arg3[%c0_7, %c1, %c0_8] : memref<1x4x256xf32, #tpu.memory_space<vmem>>, vector<1x1x256xf32>
    %18 = vector.shape_cast %17 : vector<1x1x256xf32> to vector<1x256xf32>
    %19 = vector.shape_cast %16 : vector<1x256xf32> to vector<1x1x256xf32>
    tpu.vector_store %arg3[%c0_7, %c1, %c0_8], %19 {strides = array<i32>} : memref<1x4x256xf32, #tpu.memory_space<vmem>>, vector<1x1x256xf32>,
    %c4_i32_9 = arith.constant 4 : i32
    %20 = arith.muli %arg0, %c4_i32_9 : i32
    %c2_i32 = arith.constant 2 : i32
    %21 = arith.addi %20, %c2_i32 : i32
    %22 = arith.index_cast %21 : i32 to index
    %23 = memref.load %arg1[%22] : memref<8xi32, #tpu.memory_space<smem>>
    %c0_10 = arith.constant 0 : index
    %24 = arith.index_cast %23 : i32 to index
    %c0_11 = arith.constant 0 : index
    %25 = vector.load %arg2[%c0_10, %24, %c0_11] : memref<1x4x256xf32, #tpu.memory_space<vmem>>, vector<1x1x256xf32>
    %26 = vector.shape_cast %25 : vector<1x1x256xf32> to vector<1x256xf32>
    %c0_12 = arith.constant 0 : index
    %c2 = arith.constant 2 : index
    %c0_13 = arith.constant 0 : index
    %27 = vector.load %arg3[%c0_12, %c2, %c0_13] : memref<1x4x256xf32, #tpu.memory_space<vmem>>, vector<1x1x256xf32>
    %28 = vector.shape_cast %27 : vector<1x1x256xf32> to vector<1x256xf32>
    %29 = vector.shape_cast %26 : vector<1x256xf32> to vector<1x1x256xf32>
    tpu.vector_store %arg3[%c0_12, %c2, %c0_13], %29 {strides = array<i32>} : memref<1x4x256xf32, #tpu.memory_space<vmem>>, vector<1x1x256xf32>,
    %c4_i32_14 = arith.constant 4 : i32
    %30 = arith.muli %arg0, %c4_i32_14 : i32
    %c3_i32 = arith.constant 3 : i32
    %31 = arith.addi %30, %c3_i32 : i32
    %32 = arith.index_cast %31 : i32 to index
    %33 = memref.load %arg1[%32] : memref<8xi32, #tpu.memory_space<smem>>
    %c0_15 = arith.constant 0 : index
    %34 = arith.index_cast %33 : i32 to index
    %c0_16 = arith.constant 0 : index
    %35 = vector.load %arg2[%c0_15, %34, %c0_16] : memref<1x4x256xf32, #tpu.memory_space<vmem>>, vector<1x1x256xf32>
    %36 = vector.shape_cast %35 : vector<1x1x256xf32> to vector<1x256xf32>
    %c0_17 = arith.constant 0 : index
    %c3 = arith.constant 3 : index
    %c0_18 = arith.constant 0 : index
    %37 = vector.load %arg3[%c0_17, %c3, %c0_18] : memref<1x4x256xf32, #tpu.memory_space<vmem>>, vector<1x1x256xf32>
    %38 = vector.shape_cast %37 : vector<1x1x256xf32> to vector<1x256xf32>
    %39 = vector.shape_cast %36 : vector<1x256xf32> to vector<1x1x256xf32>
    tpu.vector_store %arg3[%c0_17, %c3, %c0_18], %39 {strides = array<i32>} : memref<1x4x256xf32, #tpu.memory_space<vmem>>, vector<1x1x256xf32>,
    return
  }
  func.func @transform_0(%arg0: i32, %arg1: memref<8xi32, #tpu.memory_space<smem>>) -> (i32, i32, i32) {
    %c0_i32 = arith.constant 0 : i32
    %c0_i32_0 = arith.constant 0 : i32
    %c0_i32_1 = arith.constant 0 : i32
    return %arg0, %c0_i32, %c0_i32_0 : i32, i32, i32
  }
  func.func @transform_1(%arg0: i32, %arg1: memref<8xi32, #tpu.memory_space<smem>>) -> (i32, i32, i32) {
    %c0_i32 = arith.constant 0 : i32
    %c0_i32_0 = arith.constant 0 : i32
    %c0_i32_1 = arith.constant 0 : i32
    return %arg0, %c0_i32, %c0_i32_0 : i32, i32, i32
  }
}

</mosaic_0001>

<llo_original>
// kernel: eca_layer.2
$region0: #{eca_layer.2}
  #allocation0 [shape = 'u32[]', space=smem, size = 0x4, offset = 0x4, fixed_abs, tag = 'smem constant byte address 0x4 - core index']
  #allocation1 [shape = 'u32[72,128]{1,0:T(1,128)}', space=vmem, size = 0x9000, scoped, tag = 'internal scratch']
  #allocation2 [shape = 'f32[2,4,128]{2,1,0:T(4,128)}', space=vmem, size = 0x1000, scoped, tag = 'scratch operand']
  %s0 = inlined_call_operand.vmem [shape: f32[2,4,256], index: 0, kind: input, shape index: {}]
  %s1 = inlined_call_operand.vmem [shape: f32[2,4], index: 1, kind: output, shape index: {}]
  %s2 = sld [smem:[#allocation0]]
  $region22: #{eca_layer.2} parent=0
    _
  %s4 = ssub.s32 1, %s2
  %s5 = scalar_select 0, %s4, %s2
  // Predicated region
  $region2: #{eca_layer.2} parent=0 // pred_check
    _
  $region3: #{eca_layer.2} parent=0 // pred_check_branch
    %7 = sbr.rel (0) target = $region5
  $region4: #{eca_layer.2} parent=0 // pred_region
    _
  $region5: #{eca_layer.2} parent=0 // pred_fallthru
    _
  %v8 = vld [vmem:[%s0] sm:$0xff]
  %v9 = vld [vmem:[%s0 + $0x8] sm:$0xff]
  %p10 = scmp.eq.s32.totalorder 0, 0
  // Predicated region
  $region6: #{eca_layer.2} parent=0 // pred_check
    %p11 = pneg %p10
  $region7: #{eca_layer.2} parent=0 // pred_check_branch
    %13 = sbr.rel (%p11) target = $region9
  $region8: #{eca_layer.2} parent=0 // pred_region
    %14 = vst [vmem:[#allocation2] sm:$0xf] 0.0
    %15 = vst [vmem:[#allocation2 + $0x4] sm:$0xf] 0.0
  $region9: #{eca_layer.2} parent=0 // pred_fallthru
    _
  %v16 = vld [vmem:[#allocation2] sm:$0xf]
  %v17 = vld [vmem:[#allocation2 + $0x4] sm:$0xf]
  %v18 = vadd.f32 %v16, %v8
  %v19 = vadd.f32 %v17, %v9
  %22 = vst [vmem:[#allocation1] ss:$2 sm:$0xff] %v8
  %v23 = vld.sshfl [vmem:[#allocation1 + $0x8] sm:$0xff pattern:$0x75316420]
  %s24 = scalar_lea.vmem [#allocation1], 16
  %25 = vst [vmem:[%s24] ss:$2 sm:$0xff] %v9
  %v26 = vld.sshfl [vmem:[#allocation1 + $0x18] sm:$0xff pattern:$0x75316420]
  %v29 = vadd.f32 %v18, %v23
  %v30 = vadd.f32 %v19, %v26
  %31 = vst [vmem:[#allocation2] sm:$0xf] %v29
  %32 = vst [vmem:[#allocation2 + $0x4] sm:$0xf] %v30
  // Predicated region
  $region10: #{eca_layer.2} parent=0 // pred_check
    %p33 = pneg %p10
  $region11: #{eca_layer.2} parent=0 // pred_check_branch
    %35 = sbr.rel (%p33) target = $region13
  $region12: #{eca_layer.2} parent=0 // pred_region
    %v36 = vld [vmem:[#allocation2] sm:$0xf]
    %v37 = vld [vmem:[#allocation2 + $0x4] sm:$0xf]
    %vm38 = vcmask 1043456
    %v39 = vsel %vm38, %v36, 0.0
    %40 = vadd.xlane.f32.xlu0 %v39
    %v41 = vpop.xlane.xlu0 %40
    %v42 = vsel %vm38, %v37, 0.0
    %43 = vadd.xlane.f32.xlu0 %v42
    %v44 = vpop.xlane.xlu0 %43
    %v45 = vmul.f32 %v41, 0.00390625
    %v46 = vmul.f32 %v44, 0.00390625
    %v49 = vlaneseq
    %v50 = vand.u32 %v49, 127
    %v51 = vperm.slane %v45, %v50
    %v52 = vperm.slane %v46, %v50
    %vm53 = vcmask 1041409
    %v54 = vsel %vm53, %v52, %v51
    %vm56 = vcmask 25600
    %57 = vst.msk [vmem:[%s1] sm:$0x3] %vm56, %v54
  $region13: #{eca_layer.2} parent=0 // pred_fallthru
    _
  // Predicated region
  $region14: #{eca_layer.2} parent=0 // pred_check
    _
  $region15: #{eca_layer.2} parent=0 // pred_check_branch
    %59 = sbr.rel (0) target = $region17
  $region16: #{eca_layer.2} parent=0 // pred_region
    _
  $region17: #{eca_layer.2} parent=0 // pred_fallthru
    _
  // Predicated region
  $region18: #{eca_layer.2} parent=0 // pred_check
    _
  $region19: #{eca_layer.2} parent=0 // pred_check_branch
    %61 = sbr.rel (0) target = $region21
  $region20: #{eca_layer.2} parent=0 // pred_region
    _
  $region21: #{eca_layer.2} parent=0 // pred_fallthru
    _

// kernel: eca_layer.3
$region0: #{eca_layer.3}
  #allocation0 [shape = 'u32[]', space=smem, size = 0x4, offset = 0x4, fixed_abs, tag = 'smem constant byte address 0x4 - core index']
  #allocation1 [shape = 'u32[72,128]{1,0:T(1,128)}', space=vmem, size = 0x9000, scoped, tag = 'internal scratch']
  #allocation2 [shape = 's32[1]{0}', space=sflag, size = 0x4, scoped, tag = 'scoped memory for eca_layer.3']
  #allocation3 [shape = 'u8[512]{0}', space=smem, size = 0x200, scoped, tag = 'prefetched SMEM operand 0']
  %s0 = inlined_call_operand.vmem [shape: s32[8], index: 0, kind: input, shape index: {}]
  %s1 = inlined_call_operand.vmem [shape: f32[2,4,256], index: 1, kind: input, shape index: {}]
  %s2 = inlined_call_operand.vmem [shape: f32[2,4,256], index: 2, kind: output, shape index: {}]
  %s3 = sld [smem:[#allocation0]]
  $region37: #{eca_layer.3} parent=0
    _
  %s5 = ssub.s32 1, %s3
  %s6 = scalar_select 0, %s5, %s3
  %s8 = sshll.u32 %s0, 4
  %s9 = int_to_ptr.vmem [resolvable:$true] %s8
  %11 = dma.vmem_to_smem %s9, 16, [#allocation3], [#allocation2]
  %13 = dma.done [#allocation2], 16
  %14 = sfence
  loop: start=0, step=1, limit=4
  $region2: #{eca_layer.3} parent=0 // loop_pre_header
    _
  $region3: #{eca_layer.3} parent=0 // loop_header
    %s16 = sphi 0, %s20
    %p17 = scmp.ge.s32.totalorder %s16, 4
    %s26 = sphi 0, %s28
    %s29 = sphi 0, %s26
    %s30 = sphi 0, %s29
    %s46 = sphi 0, %s30
    %s52 = sphi 0, %s54
    %s55 = sphi 0, %s52
    %s56 = sphi 0, %s55
    %s72 = sphi 0, %s56
  $region4: #{eca_layer.3} parent=0 // loop_header_branch
    %19 = sbr.rel (%p17) target = $region8
  $region5: #{eca_layer.3} parent=0 // loop_body
    %s21 = ssub.s32 %s16, 1
    %s22 = ssub.s32 %s16, 2
    %s23 = sadd.s32 %s16, 1
    %s24 = ssub.s32 %s16, %s23
    %p25 = scmp.eq.s32.totalorder %s24, 0
    %s27 = sadd.s32 %s26, 1
    %s28 = scalar_select %p25, %s26, %s27
    %p31 = pneg %p25
    %p32 = scmp.eq.s32.totalorder %s16, 1
    %p33 = por %p31, %p32
    %p34 = scmp.ne.s32.totalorder %s26, %s29
    %p35 = scmp.eq.s32.totalorder %s16, 0
    %p36 = por %p34, %p35
    %p37 = scmp.ne.s32.totalorder %s26, %s29
    %p38 = scmp.eq.s32.totalorder %s21, 1
    %p39 = por %p37, %p38
    %p40 = scmp.ne.s32.totalorder %s29, %s30
    %p41 = scmp.eq.s32.totalorder %s21, 0
    %p42 = por %p40, %p41
    %p43 = scmp.ne.s32.totalorder %s29, %s30
    %p44 = scmp.eq.s32.totalorder %s22, 1
    %p45 = por %p43, %p44
    %p47 = scmp.ne.s32.totalorder %s30, %s46
    %p48 = scmp.eq.s32.totalorder %s22, 0
    %p49 = por %p47, %p48
    %s50 = ssub.s32 %s16, %s23
    %p51 = scmp.eq.s32.totalorder %s50, 0
    %s53 = sadd.s32 %s52, 1
    %s54 = scalar_select %p51, %s52, %s53
    %p57 = pneg %p51
    %p58 = scmp.eq.s32.totalorder %s16, 1
    %p59 = por %p57, %p58
    %p60 = scmp.ne.s32.totalorder %s52, %s55
    %p61 = scmp.eq.s32.totalorder %s16, 0
    %p62 = por %p60, %p61
    %p63 = scmp.ne.s32.totalorder %s52, %s55
    %p64 = scmp.eq.s32.totalorder %s21, 1
    %p65 = por %p63, %p64
    %p66 = scmp.ne.s32.totalorder %s55, %s56
    %p67 = scmp.eq.s32.totalorder %s21, 0
    %p68 = por %p66, %p67
    %p69 = scmp.ne.s32.totalorder %s55, %s56
    %p70 = scmp.eq.s32.totalorder %s22, 1
    %p71 = por %p69, %p70
    %p73 = scmp.ne.s32.totalorder %s56, %s72
    %p74 = scmp.eq.s32.totalorder %s22, 0
    %p75 = por %p73, %p74
    %p76 = scmp.le.s32.totalorder 1, %s16
    %p77 = scmp.lt.s32.totalorder %s16, 3
    %p78 = pnand %p76, %p77
    %p79 = pneg %p78
    // Predicated region
    $region9: #{eca_layer.3} parent=5 // pred_check
      _
    $region10: #{eca_layer.3} parent=5 // pred_check_branch
      %81 = sbr.rel (%p78) target = $region12
    $region11: #{eca_layer.3} parent=5 // pred_region
      %s82 = ssub.s32 %s16, 1
    $region12: #{eca_layer.3} parent=5 // pred_fallthru
      _
    %p83 = scmp.lt.s32.totalorder %s16, 2
    // Predicated region
    $region13: #{eca_layer.3} parent=5 // pred_check
      %p84 = pneg %p83
    $region14: #{eca_layer.3} parent=5 // pred_check_branch
      %86 = sbr.rel (%p84) target = $region16
    $region15: #{eca_layer.3} parent=5 // pred_region
      // Predicated region
      $region17: #{eca_layer.3} parent=15 // pred_check
        %p87 = pneg %p36
      $region18: #{eca_layer.3} parent=15 // pred_check_branch
        %89 = sbr.rel (%p87) target = $region20
      $region19: #{eca_layer.3} parent=15 // pred_region
        %p90 = scmp.lt.s32.totalorder %s16, 1
        %s91 = scalar_select %p90, %s16, 1
        %s92 = smul.addr %s91, 2
        %s93 = smul.addr %s92, 4
        %s94 = scalar_lea.vmem %s1, %s93
      $region20: #{eca_layer.3} parent=15 // pred_fallthru
        _
    $region16: #{eca_layer.3} parent=5 // pred_fallthru
      _
    %p95 = scmp.le.s32.totalorder 1, %s16
    %p96 = scmp.lt.s32.totalorder %s16, 3
    %p97 = pnand %p95, %p96
    %p98 = pneg %p97
    // Predicated region
    $region21: #{eca_layer.3} parent=5 // pred_check
      _
    $region22: #{eca_layer.3} parent=5 // pred_check_branch
      %100 = sbr.rel (%p97) target = $region24
    $region23: #{eca_layer.3} parent=5 // pred_region
      %s101 = ssub.s32 %s16, 1
      %p102 = scmp.lt.s32.totalorder %s21, 1
      %s103 = scalar_select %p102, %s21, 1
      %s104 = smul.addr %s103, 2
      %s105 = smul.addr %s104, 4
      %s106 = scalar_lea.vmem %s1, %s105
      %p107 = pneg %p42
      %p108 = pneg %p39
      %p109 = pneg %p68
      %p110 = pneg %p65
      %p111 = scmp.lt.s32.totalorder %s21, 1
      %s112 = scalar_select %p111, %s21, 1
      %s113 = smul.addr %s112, 2
      %s114 = smul.addr %s113, 4
      %s115 = scalar_lea.vmem %s2, %s114
      %p116 = scmp.lt.s32.totalorder %s21, 1
      %s117 = scalar_select %p116, %s21, 1
      %s118 = smul.addr %s117, 2
      %s119 = smul.addr %s118, 4
      %s120 = scalar_lea.vmem %s1, %s119
      %p121 = scmp.lt.s32.totalorder %s21, 1
      %s122 = scalar_select %p121, %s21, 1
      %s123 = smul.addr %s122, 2
      %s124 = smul.addr %s123, 4
      %s125 = scalar_lea.vmem %s2, %s124
      %s126 = smul.u32 %s21, 4
      %s127 = sld [smem:[#allocation3 + %s126]]
      %s128 = sshra.s32 %s127, 2
      %s129 = sand.u32 %s127, 3
      %s130 = sshra.s32 %s127, 2
      %s131 = sand.u32 %s127, 3
      %s132 = smul.u32 %s128, 2
      %s133 = smul.u32 %s132, 4
      %s134 = sadd.s32 %s133, %s131
      %s135 = scalar_lea.vmem %s120, %s134
      %v136 = vld [vmem:[%s135] ss:$4 sm:$0x3]
      %v137 = vlaneseq
      %vm138 = vcmp.ge.s32.totalorder %v137, 0
      %vm139 = vcmp.lt.s32.totalorder %v137, 256
      %vm140 = vmand %vm138, %vm139
      %141 = vst.msk [vmem:[%s125] ss:$4 sm:$0x3] %vm140, %v136
      %s142 = sadd.s32 %s126, 1
      %s143 = sld [smem:[#allocation3 + %s142]]
      %s144 = sshra.s32 %s143, 2
      %s145 = sand.u32 %s143, 3
      %s146 = sshra.s32 %s143, 2
      %s147 = sand.u32 %s143, 3
      %s148 = smul.u32 %s144, 2
      %s149 = smul.u32 %s148, 4
      %s150 = sadd.s32 %s149, %s147
      %s151 = scalar_lea.vmem %s120, %s150
      %v152 = vld [vmem:[%s151] ss:$4 sm:$0x3]
      %s153 = scalar_lea.vmem %s125, 1
      %154 = vst.msk [vmem:[%s153] ss:$4 sm:$0x3] %vm140, %v152
      %s155 = sadd.s32 %s126, 2
      %s156 = sld [smem:[#allocation3 + %s155]]
      %s157 = sshra.s32 %s156, 2
      %s158 = sand.u32 %s156, 3
      %s159 = sshra.s32 %s156, 2
      %s160 = sand.u32 %s156, 3
      %s161 = smul.u32 %s157, 2
      %s162 = smul.u32 %s161, 4
      %s163 = sadd.s32 %s162, %s160
      %s164 = scalar_lea.vmem %s120, %s163
      %v165 = vld [vmem:[%s164] ss:$4 sm:$0x3]
      %s166 = scalar_lea.vmem %s125, 2
      %167 = vst.msk [vmem:[%s166] ss:$4 sm:$0x3] %vm140, %v165
      %s168 = sadd.s32 %s126, 3
      %s169 = sld [smem:[#allocation3 + %s168]]
      %s170 = sshra.s32 %s169, 2
      %s171 = sand.u32 %s169, 3
      %s172 = sshra.s32 %s169, 2
      %s173 = sand.u32 %s169, 3
      %s174 = smul.u32 %s170, 2
      %s175 = smul.u32 %s174, 4
      %s176 = sadd.s32 %s175, %s173
      %s177 = scalar_lea.vmem %s120, %s176
      %v178 = vld [vmem:[%s177] ss:$4 sm:$0x3]
      %s179 = scalar_lea.vmem %s125, 3
      %180 = vst.msk [vmem:[%s179] ss:$4 sm:$0x3] %vm140, %v178
      %p181 = scmp.lt.s32.totalorder %s21, 1
      %s182 = scalar_select %p181, %s21, 1
      %s183 = smul.addr %s182, 2
      %s184 = smul.addr %s183, 4
      %s185 = scalar_lea.vmem %s2, %s184
      // Predicated region
      $region25: #{eca_layer.3} parent=23 // pred_check
        %p186 = pneg %p65
      $region26: #{eca_layer.3} parent=23 // pred_check_branch
        %188 = sbr.rel (%p186) target = $region28
      $region27: #{eca_layer.3} parent=23 // pred_region
        _
      $region28: #{eca_layer.3} parent=23 // pred_fallthru
        _
    $region24: #{eca_layer.3} parent=5 // pred_fallthru
      _
    %p189 = scmp.le.s32.totalorder 2, %s16
    // Predicated region
    $region29: #{eca_layer.3} parent=5 // pred_check
      %p190 = pneg %p189
    $region30: #{eca_layer.3} parent=5 // pred_check_branch
      %192 = sbr.rel (%p190) target = $region32
    $region31: #{eca_layer.3} parent=5 // pred_region
      %s193 = ssub.s32 %s16, 2
      // Predicated region
      $region33: #{eca_layer.3} parent=31 // pred_check
        %p194 = pneg %p71
      $region34: #{eca_layer.3} parent=31 // pred_check_branch
        %196 = sbr.rel (%p194) target = $region36
      $region35: #{eca_layer.3} parent=31 // pred_region
        %p197 = scmp.lt.s32.totalorder %s22, 1
        %s198 = scalar_select %p197, %s22, 1
        %s199 = smul.addr %s198, 2
        %s200 = smul.addr %s199, 4
        %s201 = scalar_lea.vmem %s2, %s200
      $region36: #{eca_layer.3} parent=31 // pred_fallthru
        _
    $region32: #{eca_layer.3} parent=5 // pred_fallthru
      _
  $region6: #{eca_layer.3} parent=0 // loop_footer
    %s20 = sadd.s32 1, %s16
  $region7: #{eca_layer.3} parent=0 // loop_footer_branch
    %15 = sbr.rel target = $region3
  $region8: #{eca_layer.3} parent=0 // loop_exit
    _

</llo_original>
